<compile_context>
chip_gen: v6e
topology: v6e:2x2x1
jax: 0.10.0
libtpu: 0.0.40
codegen_flags: <defaults>
</compile_context>

<pallas_src>
import jax
import jax.numpy as jnp
from jax.experimental import pallas as pl
from jax.experimental.pallas import tpu as pltpu


def _copy_kernel(x_ref, o_ref):
    # Identity copy of one (tile_r, C) tile through VMEM.
    o_ref[...] = x_ref[...]


def _flat_2d_factorization(total: int):
    """Pick a lane-dense (R, C) row-major view of `total` elements.

    Prefers the largest C in {1024, 512, 256, 128} that divides `total`
    while keeping R >= 8 (sublane-dense).  Falls back to (1, total) when
    the element count is not a multiple of 128 (block == full array, so
    the (8,128) divisibility rule is still satisfied).
    """
    best = None
    for c in (1024, 512, 256, 128):
        if total % c == 0:
            if best is None:
                best = c
            if total // c >= 8:
                return total // c, c
    if best is not None:
        return total // best, best
    # TODO(synk): non-128-divisible element counts use a single untiled block;
    # pad-and-trim would be needed to tile those too.
    return 1, total


def _choose_tile_rows(R: int, C: int, itemsize: int,
                      target_bytes: int = 2 * 1024 * 1024):
    """Rows per tile: multiple of 8, ~<= target_bytes per buffer, <= R.

    Prefers a row count that divides R so every store is a full unmasked
    tile; if none is found we fall back to 8 and let Pallas mask the ragged
    last tile.
    """
    if R <= 8:
        return R
    rows = target_bytes // max(1, C * itemsize)
    rows = max(8, (rows // 8) * 8)
    rows = min(rows, (R // 8) * 8)
    while rows > 8 and R % rows != 0:
        rows -= 8
    return rows


def reshape_forward(x, shape):
    """Pallas equivalent of Reshape(shape).forward(x).

    x: any array with leading batch dim.
    shape: tuple, the target per-example shape (prod must equal per-example size).
    """
    b = x.shape[0]
    per_example = 1
    for d in x.shape[1:]:
        per_example *= d
    target_per_example = 1
    for d in shape:
        target_per_example *= d
    assert per_example == target_per_example, (
        f"cannot reshape per-example size {per_example} into {shape}")

    total = b * per_example
    itemsize = jnp.dtype(x.dtype).itemsize

    # Metadata-only: fold batch into the sublane dim, lane-dense last dim.
    R, C = _flat_2d_factorization(total)
    x_flat = x.reshape(R, C)

    tile_r = _choose_tile_rows(R, C, itemsize)
    grid = (pl.cdiv(R, tile_r),)

    out_flat = pl.pallas_call(
        _copy_kernel,
        out_shape=jax.ShapeDtypeStruct((R, C), x.dtype),
        grid=grid,
        in_specs=[pl.BlockSpec((tile_r, C), lambda i: (i, 0))],
        out_specs=pl.BlockSpec((tile_r, C), lambda i: (i, 0)),
        # Output aliases the input buffer: no second HBM allocation / fill.
        input_output_aliases={0: 0},
        compiler_params=pltpu.CompilerParams(
            # Embarrassingly parallel copy: lets v7x shard across both TCs.
            dimension_semantics=("parallel",),
        ),
    )(x_flat)

    # Metadata-only: final reshape to (B, *shape).
    return out_flat.reshape(b, *shape)


if __name__ == "__main__":
    key = jax.random.PRNGKey(0)
    # Input matching a typical NCHW activation: batch=2, channels=4, 16x16 spatial.
    x = jax.random.normal(key, (2, 4, 16, 16), dtype=jnp.float32)

    # Target per-example shape (module's __init__ arg): (16, 64), same element count.
    target_shape = (16, 64)

    # Reference (plain JAX reshape == torch.reshape for contiguous row-major data).
    ref = x.reshape(x.shape[0], *target_shape)

    out = reshape_forward(x, target_shape)
    out = jax.block_until_ready(out)

    assert out.shape == (2, 16, 64), out.shape
    assert out.dtype == x.dtype
    assert bool(jnp.all(out == ref))

    print("KERNEL_OK")
</pallas_src>

<mosaic_0001>
module attributes {stable_mosaic.version = 11 : i64} {
  func.func @_copy_kernel(%arg0: i32, %arg1: memref<8x256xf32, #tpu.memory_space<vmem>>, %arg2: memref<8x256xf32, #tpu.memory_space<vmem>>) attributes {dimension_semantics = [#tpu.dimension_semantics<parallel>], iteration_bounds = array<i64: 1>, scalar_prefetch = 0 : i64, scratch_operands = 0 : i64, tpu.core_type = #tpu.core_type<tc>, window_params = [{transform_indices = @transform_0, window_bounds = array<i64: 8, 256>}, {transform_indices = @transform_1, window_bounds = array<i64: 8, 256>}]} {
    %c0 = arith.constant 0 : index
    %c0_0 = arith.constant 0 : index
    %0 = vector.load %arg1[%c0, %c0_0] : memref<8x256xf32, #tpu.memory_space<vmem>>, vector<8x256xf32>
    %c0_1 = arith.constant 0 : index
    %c0_2 = arith.constant 0 : index
    %1 = vector.load %arg2[%c0_1, %c0_2] : memref<8x256xf32, #tpu.memory_space<vmem>>, vector<8x256xf32>
    tpu.vector_store %arg2[%c0_1, %c0_2], %0 {strides = array<i32>} : memref<8x256xf32, #tpu.memory_space<vmem>>, vector<8x256xf32>,
    return
  }
  func.func @transform_0(%arg0: i32) -> (i32, i32) {
    %c0_i32 = arith.constant 0 : i32
    %c0_i32_0 = arith.constant 0 : i32
    return %arg0, %c0_i32 : i32, i32
  }
  func.func @transform_1(%arg0: i32) -> (i32, i32) {
    %c0_i32 = arith.constant 0 : i32
    %c0_i32_0 = arith.constant 0 : i32
    return %arg0, %c0_i32 : i32, i32
  }
}

</mosaic_0001>

<llo_original>
// kernel: tpu_custom_call.1
$region0: #{tpu_custom_call.1}
  #allocation0 [shape = 'u32[]', space=smem, size = 0x4, offset = 0x4, fixed_abs, tag = 'smem constant byte address 0x4 - core index']
  #allocation1 [shape = 'u32[144,128]{1,0:T(1,128)}', space=vmem, size = 0x12000, scoped, tag = 'internal scratch']
  %s0 = inlined_call_operand.hbm [shape: f32[8,256], index: 0, kind: input, shape index: {}, may-alias: {0,1}]
  %s1 = inlined_call_operand.hbm [shape: f32[8,256], index: 1, kind: output, shape index: {}, may-alias: {0,1}]
  %s2 = sld [smem:[#allocation0]]
  $region18: #{tpu_custom_call.1} parent=0
    _
  %s4 = ssub.s32 1, %s2
  %s5 = scalar_select 0, %s4, %s2
  $region1: #{tpu_custom_call.1} parent=0
    #allocation2 [shape = 'u8[8192]{0}', space=vmem, size = 0x2000, scoped, tag = 'input window, operand 0, single buffered']
    #allocation3 [shape = 's32[1]{0}', space=sflag, size = 0x4, scoped, tag = 'scoped memory for tpu_custom_call.1']
    #allocation4 [shape = 's32[1]{0}', space=sflag, size = 0x4, scoped, tag = 'scoped memory for tpu_custom_call.1']
    #allocation5 [shape = 'u8[8192]{0}', space=vmem, size = 0x2000, scoped, tag = 'output window, operand 0, single buffered']
    %6 = vsyncpa [#allocation3], 0
    %7 = vsyncpa [#allocation4], 0
    // Predicated region
    $region2: #{tpu_custom_call.1} parent=1 // pred_check
      _
    $region3: #{tpu_custom_call.1} parent=1 // pred_check_branch
      %9 = sbr.rel (0) target = $region5
    $region4: #{tpu_custom_call.1} parent=1 // pred_region
      %s11 = ssub.s32 256, 256
      %12 = vsyncadd [#allocation3], %s11
      %s14 = sshll.u32 [#allocation2], 4
      %s15 = int_to_ptr.vmem [resolvable:$true] %s14
      %17 = dma.hbm_to_vmem [thread:$0]  %s0, 256, %s15, [#allocation3]
    $region5: #{tpu_custom_call.1} parent=1 // pred_fallthru
      _
    // Predicated region
    $region6: #{tpu_custom_call.1} parent=1 // pred_check
      _
    $region7: #{tpu_custom_call.1} parent=1 // pred_check_branch
      %19 = sbr.rel (0) target = $region9
    $region8: #{tpu_custom_call.1} parent=1 // pred_region
      %20 = dma.done [#allocation3], 256
    $region9: #{tpu_custom_call.1} parent=1 // pred_fallthru
      _
    %v21 = vld [vmem:[#allocation2] sm:$0xff]
    %v22 = vld [vmem:[#allocation2 + $0x8] sm:$0xff]
    %23 = vst [vmem:[#allocation5] sm:$0xff] %v21
    %24 = vst [vmem:[#allocation5 + $0x8] sm:$0xff] %v22
    // Predicated region
    $region10: #{tpu_custom_call.1} parent=1 // pred_check
      _
    $region11: #{tpu_custom_call.1} parent=1 // pred_check_branch
      %26 = sbr.rel (0) target = $region13
    $region12: #{tpu_custom_call.1} parent=1 // pred_region
      %s28 = ssub.s32 256, 256
      %29 = vsyncadd [#allocation4], %s28
      %s31 = sshll.u32 [#allocation5], 4
      %s32 = int_to_ptr.vmem [resolvable:$true] %s31
      %34 = dma.vmem_to_hbm [thread:$0]  %s32, 256, %s1, [#allocation4]
    $region13: #{tpu_custom_call.1} parent=1 // pred_fallthru
      _
    // Predicated region
    $region14: #{tpu_custom_call.1} parent=1 // pred_check
      _
    $region15: #{tpu_custom_call.1} parent=1 // pred_check_branch
      %36 = sbr.rel (0) target = $region17
    $region16: #{tpu_custom_call.1} parent=1 // pred_region
      %37 = dma.done [#allocation4], 256
    $region17: #{tpu_custom_call.1} parent=1 // pred_fallthru
      _
    %38 = vsyncpa [#allocation3], 1
    %39 = vsyncpa [#allocation4], 1

</llo_original>
